<compile_context>
chip_gen: v7x
topology: tpu7x:2x2x1
jax: 0.10.0
libtpu: 0.0.40
codegen_flags: <defaults>
</compile_context>

<pallas_src>
import functools

import jax
import jax.numpy as jnp
from jax.experimental import pallas as pl
from jax.experimental.pallas import tpu as pltpu


def conv2d_kernel(x_ref, w_ref, o_ref, *, CO, CI, KH, KW):
    # x_ref: (N, CI, H, W) in VMEM
    # w_ref: (CO*CI*KH*KW,) f32 scalars in SMEM
    # o_ref: (N, CO, HO, WO) in VMEM
    N, _CI, H, W = x_ref.shape
    HO = H - KH + 1
    WO = W - KW + 1

    # One load + one upfront cast (no per-patch casts).
    xf = x_ref[...]
    if xf.dtype != jnp.float32:
        xf = xf.astype(jnp.float32)

    # Hoist the lane-axis (W) shifts: KW slices total instead of CO*CI*KH*KW.
    x_kw = [xf[:, :, :, kw:kw + WO] for kw in range(KW)]  # each (N, CI, H, WO)

    chans = []
    for co in range(CO):
        acc = jnp.zeros((N, HO, WO), jnp.float32)
        for c in range(CI):
            for kh in range(KH):
                for kw in range(KW):
                    # Scalar read from SMEM; broadcasts to the vreg for free.
                    w_s = w_ref[((co * CI + c) * KH + kh) * KW + kw]
                    # Only a sublane-axis (H) slice remains in the hot loop.
                    patch = x_kw[kw][:, c, kh:kh + HO, :]       # (N, HO, WO)
                    acc = acc + patch * w_s
        chans.append(acc)

    out = jnp.stack(chans, axis=1)                               # (N, CO, HO, WO)
    o_ref[...] = out.astype(o_ref.dtype)                         # single full-block store


def conv2d_pallas(x, w):
    N, CI, H, W = x.shape
    CO, CIw, KH, KW = w.shape
    assert CI == CIw, "input channels must match weight's in_channels"
    HO, WO = H - KH + 1, W - KW + 1

    # Flatten the weights so they can live in SMEM as plain scalars.
    w_flat = w.reshape(-1).astype(jnp.float32)                   # (CO*CI*KH*KW,)

    kernel = functools.partial(conv2d_kernel, CO=CO, CI=CI, KH=KH, KW=KW)
    return pl.pallas_call(
        kernel,
        out_shape=jax.ShapeDtypeStruct((N, CO, HO, WO), x.dtype),
        in_specs=[
            pl.BlockSpec(memory_space=pltpu.MemorySpace.VMEM),   # x: whole block
            pl.BlockSpec(memory_space=pltpu.MemorySpace.SMEM),   # w: scalars
        ],
        out_specs=pl.BlockSpec(memory_space=pltpu.MemorySpace.VMEM),
    )(x, w_flat)


if __name__ == "__main__":
    key = jax.random.PRNGKey(0)
    kx, kw = jax.random.split(key)

    # Weight shape from Module0.__init__: [1, 3, 3, 3] (OIHW)
    # => the forward expects a 3-channel NCHW input; use a small one.
    x = jax.random.normal(kx, (2, 3, 16, 16), dtype=jnp.float32)
    w = jax.random.normal(kw, (1, 3, 3, 3), dtype=jnp.float32)

    out = conv2d_pallas(x, w)
    out = jax.block_until_ready(out)

    # Sanity check against XLA's conv (same semantics as F.conv2d, valid padding).
    ref = jax.lax.conv_general_dilated(
        x, w, window_strides=(1, 1), padding="VALID",
        dimension_numbers=("NCHW", "OIHW", "NCHW"))
    assert out.shape == (2, 1, 14, 14)
    assert jnp.allclose(out, ref, atol=1e-4, rtol=1e-4)

    print("KERNEL_OK")
</pallas_src>

<mosaic_0001>
module attributes {stable_mosaic.version = 11 : i64} {
  func.func @conv2d_kernel(%arg0: memref<2x3x16x16xf32, #tpu.memory_space<vmem>>, %arg1: memref<27xf32, #tpu.memory_space<smem>>, %arg2: memref<2x1x14x14xf32, #tpu.memory_space<vmem>>) attributes {dimension_semantics = [], scalar_prefetch = 0 : i64, scratch_operands = 0 : i64, tpu.core_type = #tpu.core_type<tc>} {
    %c0 = arith.constant 0 : index
    %c0_0 = arith.constant 0 : index
    %c0_1 = arith.constant 0 : index
    %c0_2 = arith.constant 0 : index
    %0 = vector.load %arg0[%c0, %c0_0, %c0_1, %c0_2] : memref<2x3x16x16xf32, #tpu.memory_space<vmem>>, vector<2x3x16x16xf32>
    %1 = vector.extract_strided_slice %0 {offsets = [0, 0, 0, 0], sizes = [2, 3, 16, 14], strides = [1, 1, 1, 1]} : vector<2x3x16x16xf32> to vector<2x3x16x14xf32>
    %2 = vector.extract_strided_slice %0 {offsets = [0, 0, 0, 1], sizes = [2, 3, 16, 14], strides = [1, 1, 1, 1]} : vector<2x3x16x16xf32> to vector<2x3x16x14xf32>
    %3 = vector.extract_strided_slice %0 {offsets = [0, 0, 0, 2], sizes = [2, 3, 16, 14], strides = [1, 1, 1, 1]} : vector<2x3x16x16xf32> to vector<2x3x16x14xf32>
    %cst = arith.constant 0.000000e+00 : f32
    %4 = vector.broadcast %cst : f32 to vector<2x14x14xf32>
    %c0_3 = arith.constant 0 : index
    %5 = memref.load %arg1[%c0_3] : memref<27xf32, #tpu.memory_space<smem>>
    %6 = vector.extract_strided_slice %1 {offsets = [0, 0, 0, 0], sizes = [2, 1, 14, 14], strides = [1, 1, 1, 1]} : vector<2x3x16x14xf32> to vector<2x1x14x14xf32>
    %7 = vector.shape_cast %6 : vector<2x1x14x14xf32> to vector<2x14x14xf32>
    %8 = vector.broadcast %5 : f32 to vector<2x14x14xf32>
    %9 = arith.mulf %7, %8 : vector<2x14x14xf32>
    %10 = arith.addf %4, %9 : vector<2x14x14xf32>
    %c1 = arith.constant 1 : index
    %11 = memref.load %arg1[%c1] : memref<27xf32, #tpu.memory_space<smem>>
    %12 = vector.extract_strided_slice %2 {offsets = [0, 0, 0, 0], sizes = [2, 1, 14, 14], strides = [1, 1, 1, 1]} : vector<2x3x16x14xf32> to vector<2x1x14x14xf32>
    %13 = vector.shape_cast %12 : vector<2x1x14x14xf32> to vector<2x14x14xf32>
    %14 = vector.broadcast %11 : f32 to vector<2x14x14xf32>
    %15 = arith.mulf %13, %14 : vector<2x14x14xf32>
    %16 = arith.addf %10, %15 : vector<2x14x14xf32>
    %c2 = arith.constant 2 : index
    %17 = memref.load %arg1[%c2] : memref<27xf32, #tpu.memory_space<smem>>
    %18 = vector.extract_strided_slice %3 {offsets = [0, 0, 0, 0], sizes = [2, 1, 14, 14], strides = [1, 1, 1, 1]} : vector<2x3x16x14xf32> to vector<2x1x14x14xf32>
    %19 = vector.shape_cast %18 : vector<2x1x14x14xf32> to vector<2x14x14xf32>
    %20 = vector.broadcast %17 : f32 to vector<2x14x14xf32>
    %21 = arith.mulf %19, %20 : vector<2x14x14xf32>
    %22 = arith.addf %16, %21 : vector<2x14x14xf32>
    %c3 = arith.constant 3 : index
    %23 = memref.load %arg1[%c3] : memref<27xf32, #tpu.memory_space<smem>>
    %24 = vector.extract_strided_slice %1 {offsets = [0, 0, 1, 0], sizes = [2, 1, 14, 14], strides = [1, 1, 1, 1]} : vector<2x3x16x14xf32> to vector<2x1x14x14xf32>
    %25 = vector.shape_cast %24 : vector<2x1x14x14xf32> to vector<2x14x14xf32>
    %26 = vector.broadcast %23 : f32 to vector<2x14x14xf32>
    %27 = arith.mulf %25, %26 : vector<2x14x14xf32>
    %28 = arith.addf %22, %27 : vector<2x14x14xf32>
    %c4 = arith.constant 4 : index
    %29 = memref.load %arg1[%c4] : memref<27xf32, #tpu.memory_space<smem>>
    %30 = vector.extract_strided_slice %2 {offsets = [0, 0, 1, 0], sizes = [2, 1, 14, 14], strides = [1, 1, 1, 1]} : vector<2x3x16x14xf32> to vector<2x1x14x14xf32>
    %31 = vector.shape_cast %30 : vector<2x1x14x14xf32> to vector<2x14x14xf32>
    %32 = vector.broadcast %29 : f32 to vector<2x14x14xf32>
    %33 = arith.mulf %31, %32 : vector<2x14x14xf32>
    %34 = arith.addf %28, %33 : vector<2x14x14xf32>
    %c5 = arith.constant 5 : index
    %35 = memref.load %arg1[%c5] : memref<27xf32, #tpu.memory_space<smem>>
    %36 = vector.extract_strided_slice %3 {offsets = [0, 0, 1, 0], sizes = [2, 1, 14, 14], strides = [1, 1, 1, 1]} : vector<2x3x16x14xf32> to vector<2x1x14x14xf32>
    %37 = vector.shape_cast %36 : vector<2x1x14x14xf32> to vector<2x14x14xf32>
    %38 = vector.broadcast %35 : f32 to vector<2x14x14xf32>
    %39 = arith.mulf %37, %38 : vector<2x14x14xf32>
    %40 = arith.addf %34, %39 : vector<2x14x14xf32>
    %c6 = arith.constant 6 : index
    %41 = memref.load %arg1[%c6] : memref<27xf32, #tpu.memory_space<smem>>
    %42 = vector.extract_strided_slice %1 {offsets = [0, 0, 2, 0], sizes = [2, 1, 14, 14], strides = [1, 1, 1, 1]} : vector<2x3x16x14xf32> to vector<2x1x14x14xf32>
    %43 = vector.shape_cast %42 : vector<2x1x14x14xf32> to vector<2x14x14xf32>
    %44 = vector.broadcast %41 : f32 to vector<2x14x14xf32>
    %45 = arith.mulf %43, %44 : vector<2x14x14xf32>
    %46 = arith.addf %40, %45 : vector<2x14x14xf32>
    %c7 = arith.constant 7 : index
    %47 = memref.load %arg1[%c7] : memref<27xf32, #tpu.memory_space<smem>>
    %48 = vector.extract_strided_slice %2 {offsets = [0, 0, 2, 0], sizes = [2, 1, 14, 14], strides = [1, 1, 1, 1]} : vector<2x3x16x14xf32> to vector<2x1x14x14xf32>
    %49 = vector.shape_cast %48 : vector<2x1x14x14xf32> to vector<2x14x14xf32>
    %50 = vector.broadcast %47 : f32 to vector<2x14x14xf32>
    %51 = arith.mulf %49, %50 : vector<2x14x14xf32>
    %52 = arith.addf %46, %51 : vector<2x14x14xf32>
    %c8 = arith.constant 8 : index
    %53 = memref.load %arg1[%c8] : memref<27xf32, #tpu.memory_space<smem>>
    %54 = vector.extract_strided_slice %3 {offsets = [0, 0, 2, 0], sizes = [2, 1, 14, 14], strides = [1, 1, 1, 1]} : vector<2x3x16x14xf32> to vector<2x1x14x14xf32>
    %55 = vector.shape_cast %54 : vector<2x1x14x14xf32> to vector<2x14x14xf32>
    %56 = vector.broadcast %53 : f32 to vector<2x14x14xf32>
    %57 = arith.mulf %55, %56 : vector<2x14x14xf32>
    %58 = arith.addf %52, %57 : vector<2x14x14xf32>
    %c9 = arith.constant 9 : index
    %59 = memref.load %arg1[%c9] : memref<27xf32, #tpu.memory_space<smem>>
    %60 = vector.extract_strided_slice %1 {offsets = [0, 1, 0, 0], sizes = [2, 1, 14, 14], strides = [1, 1, 1, 1]} : vector<2x3x16x14xf32> to vector<2x1x14x14xf32>
    %61 = vector.shape_cast %60 : vector<2x1x14x14xf32> to vector<2x14x14xf32>
    %62 = vector.broadcast %59 : f32 to vector<2x14x14xf32>
    %63 = arith.mulf %61, %62 : vector<2x14x14xf32>
    %64 = arith.addf %58, %63 : vector<2x14x14xf32>
    %c10 = arith.constant 10 : index
    %65 = memref.load %arg1[%c10] : memref<27xf32, #tpu.memory_space<smem>>
    %66 = vector.extract_strided_slice %2 {offsets = [0, 1, 0, 0], sizes = [2, 1, 14, 14], strides = [1, 1, 1, 1]} : vector<2x3x16x14xf32> to vector<2x1x14x14xf32>
    %67 = vector.shape_cast %66 : vector<2x1x14x14xf32> to vector<2x14x14xf32>
    %68 = vector.broadcast %65 : f32 to vector<2x14x14xf32>
    %69 = arith.mulf %67, %68 : vector<2x14x14xf32>
    %70 = arith.addf %64, %69 : vector<2x14x14xf32>
    %c11 = arith.constant 11 : index
    %71 = memref.load %arg1[%c11] : memref<27xf32, #tpu.memory_space<smem>>
    %72 = vector.extract_strided_slice %3 {offsets = [0, 1, 0, 0], sizes = [2, 1, 14, 14], strides = [1, 1, 1, 1]} : vector<2x3x16x14xf32> to vector<2x1x14x14xf32>
    %73 = vector.shape_cast %72 : vector<2x1x14x14xf32> to vector<2x14x14xf32>
    %74 = vector.broadcast %71 : f32 to vector<2x14x14xf32>
    %75 = arith.mulf %73, %74 : vector<2x14x14xf32>
    %76 = arith.addf %70, %75 : vector<2x14x14xf32>
    %c12 = arith.constant 12 : index
    %77 = memref.load %arg1[%c12] : memref<27xf32, #tpu.memory_space<smem>>
    %78 = vector.extract_strided_slice %1 {offsets = [0, 1, 1, 0], sizes = [2, 1, 14, 14], strides = [1, 1, 1, 1]} : vector<2x3x16x14xf32> to vector<2x1x14x14xf32>
    %79 = vector.shape_cast %78 : vector<2x1x14x14xf32> to vector<2x14x14xf32>
    %80 = vector.broadcast %77 : f32 to vector<2x14x14xf32>
    %81 = arith.mulf %79, %80 : vector<2x14x14xf32>
    %82 = arith.addf %76, %81 : vector<2x14x14xf32>
    %c13 = arith.constant 13 : index
    %83 = memref.load %arg1[%c13] : memref<27xf32, #tpu.memory_space<smem>>
    %84 = vector.extract_strided_slice %2 {offsets = [0, 1, 1, 0], sizes = [2, 1, 14, 14], strides = [1, 1, 1, 1]} : vector<2x3x16x14xf32> to vector<2x1x14x14xf32>
    %85 = vector.shape_cast %84 : vector<2x1x14x14xf32> to vector<2x14x14xf32>
    %86 = vector.broadcast %83 : f32 to vector<2x14x14xf32>
    %87 = arith.mulf %85, %86 : vector<2x14x14xf32>
    %88 = arith.addf %82, %87 : vector<2x14x14xf32>
    %c14 = arith.constant 14 : index
    %89 = memref.load %arg1[%c14] : memref<27xf32, #tpu.memory_space<smem>>
    %90 = vector.extract_strided_slice %3 {offsets = [0, 1, 1, 0], sizes = [2, 1, 14, 14], strides = [1, 1, 1, 1]} : vector<2x3x16x14xf32> to vector<2x1x14x14xf32>
    %91 = vector.shape_cast %90 : vector<2x1x14x14xf32> to vector<2x14x14xf32>
    %92 = vector.broadcast %89 : f32 to vector<2x14x14xf32>
    %93 = arith.mulf %91, %92 : vector<2x14x14xf32>
    %94 = arith.addf %88, %93 : vector<2x14x14xf32>
    %c15 = arith.constant 15 : index
    %95 = memref.load %arg1[%c15] : memref<27xf32, #tpu.memory_space<smem>>
    %96 = vector.extract_strided_slice %1 {offsets = [0, 1, 2, 0], sizes = [2, 1, 14, 14], strides = [1, 1, 1, 1]} : vector<2x3x16x14xf32> to vector<2x1x14x14xf32>
    %97 = vector.shape_cast %96 : vector<2x1x14x14xf32> to vector<2x14x14xf32>
    %98 = vector.broadcast %95 : f32 to vector<2x14x14xf32>
    %99 = arith.mulf %97, %98 : vector<2x14x14xf32>
    %100 = arith.addf %94, %99 : vector<2x14x14xf32>
    %c16 = arith.constant 16 : index
    %101 = memref.load %arg1[%c16] : memref<27xf32, #tpu.memory_space<smem>>
    %102 = vector.extract_strided_slice %2 {offsets = [0, 1, 2, 0], sizes = [2, 1, 14, 14], strides = [1, 1, 1, 1]} : vector<2x3x16x14xf32> to vector<2x1x14x14xf32>
    %103 = vector.shape_cast %102 : vector<2x1x14x14xf32> to vector<2x14x14xf32>
    %104 = vector.broadcast %101 : f32 to vector<2x14x14xf32>
    %105 = arith.mulf %103, %104 : vector<2x14x14xf32>
    %106 = arith.addf %100, %105 : vector<2x14x14xf32>
    %c17 = arith.constant 17 : index
    %107 = memref.load %arg1[%c17] : memref<27xf32, #tpu.memory_space<smem>>
    %108 = vector.extract_strided_slice %3 {offsets = [0, 1, 2, 0], sizes = [2, 1, 14, 14], strides = [1, 1, 1, 1]} : vector<2x3x16x14xf32> to vector<2x1x14x14xf32>
    %109 = vector.shape_cast %108 : vector<2x1x14x14xf32> to vector<2x14x14xf32>
    %110 = vector.broadcast %107 : f32 to vector<2x14x14xf32>
    %111 = arith.mulf %109, %110 : vector<2x14x14xf32>
    %112 = arith.addf %106, %111 : vector<2x14x14xf32>
    %c18 = arith.constant 18 : index
    %113 = memref.load %arg1[%c18] : memref<27xf32, #tpu.memory_space<smem>>
    %114 = vector.extract_strided_slice %1 {offsets = [0, 2, 0, 0], sizes = [2, 1, 14, 14], strides = [1, 1, 1, 1]} : vector<2x3x16x14xf32> to vector<2x1x14x14xf32>
    %115 = vector.shape_cast %114 : vector<2x1x14x14xf32> to vector<2x14x14xf32>
    %116 = vector.broadcast %113 : f32 to vector<2x14x14xf32>
    %117 = arith.mulf %115, %116 : vector<2x14x14xf32>
    %118 = arith.addf %112, %117 : vector<2x14x14xf32>
    %c19 = arith.constant 19 : index
    %119 = memref.load %arg1[%c19] : memref<27xf32, #tpu.memory_space<smem>>
    %120 = vector.extract_strided_slice %2 {offsets = [0, 2, 0, 0], sizes = [2, 1, 14, 14], strides = [1, 1, 1, 1]} : vector<2x3x16x14xf32> to vector<2x1x14x14xf32>
    %121 = vector.shape_cast %120 : vector<2x1x14x14xf32> to vector<2x14x14xf32>
    %122 = vector.broadcast %119 : f32 to vector<2x14x14xf32>
    %123 = arith.mulf %121, %122 : vector<2x14x14xf32>
    %124 = arith.addf %118, %123 : vector<2x14x14xf32>
    %c20 = arith.constant 20 : index
    %125 = memref.load %arg1[%c20] : memref<27xf32, #tpu.memory_space<smem>>
    %126 = vector.extract_strided_slice %3 {offsets = [0, 2, 0, 0], sizes = [2, 1, 14, 14], strides = [1, 1, 1, 1]} : vector<2x3x16x14xf32> to vector<2x1x14x14xf32>
    %127 = vector.shape_cast %126 : vector<2x1x14x14xf32> to vector<2x14x14xf32>
    %128 = vector.broadcast %125 : f32 to vector<2x14x14xf32>
    %129 = arith.mulf %127, %128 : vector<2x14x14xf32>
    %130 = arith.addf %124, %129 : vector<2x14x14xf32>
    %c21 = arith.constant 21 : index
    %131 = memref.load %arg1[%c21] : memref<27xf32, #tpu.memory_space<smem>>
    %132 = vector.extract_strided_slice %1 {offsets = [0, 2, 1, 0], sizes = [2, 1, 14, 14], strides = [1, 1, 1, 1]} : vector<2x3x16x14xf32> to vector<2x1x14x14xf32>
    %133 = vector.shape_cast %132 : vector<2x1x14x14xf32> to vector<2x14x14xf32>
    %134 = vector.broadcast %131 : f32 to vector<2x14x14xf32>
    %135 = arith.mulf %133, %134 : vector<2x14x14xf32>
    %136 = arith.addf %130, %135 : vector<2x14x14xf32>
    %c22 = arith.constant 22 : index
    %137 = memref.load %arg1[%c22] : memref<27xf32, #tpu.memory_space<smem>>
    %138 = vector.extract_strided_slice %2 {offsets = [0, 2, 1, 0], sizes = [2, 1, 14, 14], strides = [1, 1, 1, 1]} : vector<2x3x16x14xf32> to vector<2x1x14x14xf32>
    %139 = vector.shape_cast %138 : vector<2x1x14x14xf32> to vector<2x14x14xf32>
    %140 = vector.broadcast %137 : f32 to vector<2x14x14xf32>
    %141 = arith.mulf %139, %140 : vector<2x14x14xf32>
    %142 = arith.addf %136, %141 : vector<2x14x14xf32>
    %c23 = arith.constant 23 : index
    %143 = memref.load %arg1[%c23] : memref<27xf32, #tpu.memory_space<smem>>
    %144 = vector.extract_strided_slice %3 {offsets = [0, 2, 1, 0], sizes = [2, 1, 14, 14], strides = [1, 1, 1, 1]} : vector<2x3x16x14xf32> to vector<2x1x14x14xf32>
    %145 = vector.shape_cast %144 : vector<2x1x14x14xf32> to vector<2x14x14xf32>
    %146 = vector.broadcast %143 : f32 to vector<2x14x14xf32>
    %147 = arith.mulf %145, %146 : vector<2x14x14xf32>
    %148 = arith.addf %142, %147 : vector<2x14x14xf32>
    %c24 = arith.constant 24 : index
    %149 = memref.load %arg1[%c24] : memref<27xf32, #tpu.memory_space<smem>>
    %150 = vector.extract_strided_slice %1 {offsets = [0, 2, 2, 0], sizes = [2, 1, 14, 14], strides = [1, 1, 1, 1]} : vector<2x3x16x14xf32> to vector<2x1x14x14xf32>
    %151 = vector.shape_cast %150 : vector<2x1x14x14xf32> to vector<2x14x14xf32>
    %152 = vector.broadcast %149 : f32 to vector<2x14x14xf32>
    %153 = arith.mulf %151, %152 : vector<2x14x14xf32>
    %154 = arith.addf %148, %153 : vector<2x14x14xf32>
    %c25 = arith.constant 25 : index
    %155 = memref.load %arg1[%c25] : memref<27xf32, #tpu.memory_space<smem>>
    %156 = vector.extract_strided_slice %2 {offsets = [0, 2, 2, 0], sizes = [2, 1, 14, 14], strides = [1, 1, 1, 1]} : vector<2x3x16x14xf32> to vector<2x1x14x14xf32>
    %157 = vector.shape_cast %156 : vector<2x1x14x14xf32> to vector<2x14x14xf32>
    %158 = vector.broadcast %155 : f32 to vector<2x14x14xf32>
    %159 = arith.mulf %157, %158 : vector<2x14x14xf32>
    %160 = arith.addf %154, %159 : vector<2x14x14xf32>
    %c26 = arith.constant 26 : index
    %161 = memref.load %arg1[%c26] : memref<27xf32, #tpu.memory_space<smem>>
    %162 = vector.extract_strided_slice %3 {offsets = [0, 2, 2, 0], sizes = [2, 1, 14, 14], strides = [1, 1, 1, 1]} : vector<2x3x16x14xf32> to vector<2x1x14x14xf32>
    %163 = vector.shape_cast %162 : vector<2x1x14x14xf32> to vector<2x14x14xf32>
    %164 = vector.broadcast %161 : f32 to vector<2x14x14xf32>
    %165 = arith.mulf %163, %164 : vector<2x14x14xf32>
    %166 = arith.addf %160, %165 : vector<2x14x14xf32>
    %167 = vector.shape_cast %166 : vector<2x14x14xf32> to vector<2x1x14x14xf32>
    %c0_4 = arith.constant 0 : index
    %c0_5 = arith.constant 0 : index
    %c0_6 = arith.constant 0 : index
    %c0_7 = arith.constant 0 : index
    %168 = vector.load %arg2[%c0_4, %c0_5, %c0_6, %c0_7] : memref<2x1x14x14xf32, #tpu.memory_space<vmem>>, vector<2x1x14x14xf32>
    tpu.vector_store %arg2[%c0_4, %c0_5, %c0_6, %c0_7], %167 {strides = array<i32>} : memref<2x1x14x14xf32, #tpu.memory_space<vmem>>, vector<2x1x14x14xf32>,
    return
  }
}

</mosaic_0001>

<llo_original>
// kernel: tpu_custom_call.1
$region0: #{tpu_custom_call.1}
  #allocation0 [shape = 'u32[]', space=smem, size = 0x4, offset = 0x4, fixed_abs, tag = 'smem constant byte address 0x4 - core index']
  #allocation1 [shape = 'u32[144,128]{1,0:T(1,128)}', space=vmem, size = 0x12000, scoped, tag = 'internal scratch']
  %s0 = inlined_call_operand.hbm [shape: f32[2,3,16,16], index: 0, kind: input, shape index: {}]
  %s1 = inlined_call_operand.vmem [shape: f32[27], index: 1, kind: input, shape index: {}]
  %s2 = inlined_call_operand.vmem [shape: f32[2,1,14,14], index: 2, kind: output, shape index: {}]
  %s3 = sld [smem:[#allocation0]]
  $region26: #{tpu_custom_call.1} parent=0
    _
  %s5 = ssub.s32 1, %s3
  %s6 = scalar_select 0, %s5, %s3
  $region1: #{tpu_custom_call.1} parent=0
    #allocation2 [shape = 'u8[49152]{0}', space=vmem, size = 0xc000, scoped, tag = 'input window, operand 0, single buffered']
    #allocation3 [shape = 's32[1]{0}', space=sflag, size = 0x4, scoped, tag = 'scoped memory for tpu_custom_call.1']
    #allocation4 [shape = 's32[1]{0}', space=sflag, size = 0x4, scoped, tag = 'scoped memory for tpu_custom_call.1']
    #allocation5 [shape = 'u8[512]{0}', space=smem, size = 0x200, scoped, tag = 'input window, operand 1, single buffered']
    %7 = vsyncpa [#allocation3], 0
    %8 = vsyncpa [#allocation4], 0
    // Predicated region
    $region2: #{tpu_custom_call.1} parent=1 // pred_check
      _
    $region3: #{tpu_custom_call.1} parent=1 // pred_check_branch
      %10 = sbr.rel (0) target = $region5
    $region4: #{tpu_custom_call.1} parent=1 // pred_region
      %s12 = ssub.s32 1536, 1536
      %13 = vsyncadd [#allocation3], %s12
      %s14 = sshll.u32 [#allocation2], 4
      %s15 = int_to_ptr.vmem [resolvable:$true] %s14
      %20 = dma.hbm_to_vmem [thread:$0]  %s0, 1536, %s15, [#allocation3], 128, 128, 8
    $region5: #{tpu_custom_call.1} parent=1 // pred_fallthru
      _
    // Predicated region
    $region6: #{tpu_custom_call.1} parent=1 // pred_check
      _
    $region7: #{tpu_custom_call.1} parent=1 // pred_check_branch
      %22 = sbr.rel (0) target = $region9
    $region8: #{tpu_custom_call.1} parent=1 // pred_region
      %s24 = ssub.s32 16, 16
      %25 = vsyncadd [#allocation4], %s24
      %s27 = sshll.u32 %s1, 4
      %s28 = int_to_ptr.vmem [resolvable:$true] %s27
      %30 = dma.vmem_to_smem %s28, 16, [#allocation5], [#allocation4]
    $region9: #{tpu_custom_call.1} parent=1 // pred_fallthru
      _
    // Predicated region
    $region10: #{tpu_custom_call.1} parent=1 // pred_check
      _
    $region11: #{tpu_custom_call.1} parent=1 // pred_check_branch
      %32 = sbr.rel (0) target = $region13
    $region12: #{tpu_custom_call.1} parent=1 // pred_region
      %33 = dma.done [#allocation3], 1536
    $region13: #{tpu_custom_call.1} parent=1 // pred_fallthru
      _
    // Predicated region
    $region14: #{tpu_custom_call.1} parent=1 // pred_check
      _
    $region15: #{tpu_custom_call.1} parent=1 // pred_check_branch
      %35 = sbr.rel (0) target = $region17
    $region16: #{tpu_custom_call.1} parent=1 // pred_region
      %36 = dma.done [#allocation4], 16
    $region17: #{tpu_custom_call.1} parent=1 // pred_fallthru
      _
    %37 = sfence
    %v38 = vld [vmem:[#allocation2] sm:$0xff]
    %v39 = vld [vmem:[#allocation2 + $0x8] sm:$0xff]
    %v40 = vld [vmem:[#allocation2 + $0x10] sm:$0xff]
    %v41 = vld [vmem:[#allocation2 + $0x18] sm:$0xff]
    %v42 = vld [vmem:[#allocation2 + $0x20] sm:$0xff]
    %v43 = vld [vmem:[#allocation2 + $0x28] sm:$0xff]
    %v44 = vld [vmem:[#allocation2 + $0x30] sm:$0xff]
    %v45 = vld [vmem:[#allocation2 + $0x38] sm:$0xff]
    %v46 = vld [vmem:[#allocation2 + $0x40] sm:$0xff]
    %v47 = vld [vmem:[#allocation2 + $0x48] sm:$0xff]
    %v48 = vld [vmem:[#allocation2 + $0x50] sm:$0xff]
    %v49 = vld [vmem:[#allocation2 + $0x58] sm:$0xff]
    %s50 = sld [smem:[#allocation5]]
    %v51 = vstv %s50
    %v52 = vmul.f32 %v38, %v51
    %v53 = vmul.f32 %v39, %v51
    %v54 = vmul.f32 %v44, %v51
    %v55 = vmul.f32 %v45, %v51
    %v56 = vadd.f32 %v52, 0.0
    %v57 = vadd.f32 %v53, 0.0
    %v58 = vadd.f32 %v54, 0.0
    %v59 = vadd.f32 %v55, 0.0
    %s60 = sld [smem:[#allocation5 + $0x1]]
    %v61 = vstv %s60
    %v62 = vmul.f32 %v38, %v61
    %v63 = vmul.f32 %v39, %v61
    %v64 = vmul.f32 %v44, %v61
    %v65 = vmul.f32 %v45, %v61
    %70 = vrot.lane.b32.xlu0 %v62, 127
    %v71 = vpop.permute.xlu0 %70
    %72 = vrot.lane.b32.xlu0 %v63, 127
    %v73 = vpop.permute.xlu0 %72
    %74 = vrot.lane.b32.xlu0 %v64, 127
    %v75 = vpop.permute.xlu0 %74
    %76 = vrot.lane.b32.xlu0 %v65, 127
    %v77 = vpop.permute.xlu0 %76
    %v82 = vadd.f32 %v56, %v71
    %v83 = vadd.f32 %v57, %v73
    %v84 = vadd.f32 %v58, %v75
    %v85 = vadd.f32 %v59, %v77
    %s86 = sld [smem:[#allocation5 + $0x2]]
    %v87 = vstv %s86
    %v88 = vmul.f32 %v38, %v87
    %v89 = vmul.f32 %v39, %v87
    %v90 = vmul.f32 %v44, %v87
    %v91 = vmul.f32 %v45, %v87
    %96 = vrot.lane.b32.xlu0 %v88, 126
    %v97 = vpop.permute.xlu0 %96
    %98 = vrot.lane.b32.xlu0 %v89, 126
    %v99 = vpop.permute.xlu0 %98
    %100 = vrot.lane.b32.xlu0 %v90, 126
    %v101 = vpop.permute.xlu0 %100
    %102 = vrot.lane.b32.xlu0 %v91, 126
    %v103 = vpop.permute.xlu0 %102
    %v108 = vadd.f32 %v82, %v97
    %v109 = vadd.f32 %v83, %v99
    %v110 = vadd.f32 %v84, %v101
    %v111 = vadd.f32 %v85, %v103
    %s112 = sld [smem:[#allocation5 + $0x3]]
    %v113 = vstv %s112
    %v114 = vmul.f32 %v38, %v113
    %v115 = vmul.f32 %v39, %v113
    %v116 = vmul.f32 %v44, %v113
    %v117 = vmul.f32 %v45, %v113
    %vm122 = vcmask 1046528
    %v123 = vrot.slane %v114, 1
    %v124 = vrot.slane %v115, 1
    %v125 = vsel %vm122, %v123, %v124
    %v126 = vrot.slane %v116, 1
    %v127 = vrot.slane %v117, 1
    %v128 = vsel %vm122, %v126, %v127
    %v133 = vadd.f32 %v108, %v125
    %v134 = vadd.f32 %v109, %v124
    %v135 = vadd.f32 %v110, %v128
    %v136 = vadd.f32 %v111, %v127
    %s137 = sld [smem:[#allocation5 + $0x4]]
    %v138 = vstv %s137
    %v139 = vmul.f32 %v38, %v138
    %v140 = vmul.f32 %v39, %v138
    %v141 = vmul.f32 %v44, %v138
    %v142 = vmul.f32 %v45, %v138
    %v147 = vrot.slane %v139, 1
    %v148 = vrot.slane %v140, 1
    %v149 = vsel %vm122, %v147, %v148
    %v150 = vrot.slane %v141, 1
    %v151 = vrot.slane %v142, 1
    %v152 = vsel %vm122, %v150, %v151
    %153 = vrot.lane.b32.xlu0 %v149, 127
    %v154 = vpop.permute.xlu0 %153
    %155 = vrot.lane.b32.xlu0 %v148, 127
    %v156 = vpop.permute.xlu0 %155
    %157 = vrot.lane.b32.xlu0 %v152, 127
    %v158 = vpop.permute.xlu0 %157
    %159 = vrot.lane.b32.xlu0 %v151, 127
    %v160 = vpop.permute.xlu0 %159
    %v165 = vadd.f32 %v133, %v154
    %v166 = vadd.f32 %v134, %v156
    %v167 = vadd.f32 %v135, %v158
    %v168 = vadd.f32 %v136, %v160
    %s169 = sld [smem:[#allocation5 + $0x5]]
    %v170 = vstv %s169
    %v171 = vmul.f32 %v38, %v170
    %v172 = vmul.f32 %v39, %v170
    %v173 = vmul.f32 %v44, %v170
    %v174 = vmul.f32 %v45, %v170
    %v179 = vrot.slane %v171, 1
    %v180 = vrot.slane %v172, 1
    %v181 = vsel %vm122, %v179, %v180
    %v182 = vrot.slane %v173, 1
    %v183 = vrot.slane %v174, 1
    %v184 = vsel %vm122, %v182, %v183
    %185 = vrot.lane.b32.xlu0 %v181, 126
    %v186 = vpop.permute.xlu0 %185
    %187 = vrot.lane.b32.xlu0 %v180, 126
    %v188 = vpop.permute.xlu0 %187
    %189 = vrot.lane.b32.xlu0 %v184, 126
    %v190 = vpop.permute.xlu0 %189
    %191 = vrot.lane.b32.xlu0 %v183, 126
    %v192 = vpop.permute.xlu0 %191
    %v197 = vadd.f32 %v165, %v186
    %v198 = vadd.f32 %v166, %v188
    %v199 = vadd.f32 %v167, %v190
    %v200 = vadd.f32 %v168, %v192
    %s201 = sld [smem:[#allocation5 + $0x6]]
    %v202 = vstv %s201
    %v203 = vmul.f32 %v38, %v202
    %v204 = vmul.f32 %v39, %v202
    %v205 = vmul.f32 %v44, %v202
    %v206 = vmul.f32 %v45, %v202
    %vm211 = vcmask 1045504
    %v212 = vrot.slane %v203, 2
    %v213 = vrot.slane %v204, 2
    %v214 = vsel %vm211, %v212, %v213
    %v215 = vrot.slane %v205, 2
    %v216 = vrot.slane %v206, 2
    %v217 = vsel %vm211, %v215, %v216
    %v222 = vadd.f32 %v197, %v214
    %v223 = vadd.f32 %v198, %v213
    %v224 = vadd.f32 %v199, %v217
    %v225 = vadd.f32 %v200, %v216
    %s226 = sld [smem:[#allocation5 + $0x7]]
    %v227 = vstv %s226
    %v228 = vmul.f32 %v38, %v227
    %v229 = vmul.f32 %v39, %v227
    %v230 = vmul.f32 %v44, %v227
    %v231 = vmul.f32 %v45, %v227
    %v236 = vrot.slane %v228, 2
    %v237 = vrot.slane %v229, 2
    %v238 = vsel %vm211, %v236, %v237
    %v239 = vrot.slane %v230, 2
    %v240 = vrot.slane %v231, 2
    %v241 = vsel %vm211, %v239, %v240
    %242 = vrot.lane.b32.xlu0 %v238, 127
    %v243 = vpop.permute.xlu0 %242
    %244 = vrot.lane.b32.xlu0 %v237, 127
    %v245 = vpop.permute.xlu0 %244
    %246 = vrot.lane.b32.xlu0 %v241, 127
    %v247 = vpop.permute.xlu0 %246
    %248 = vrot.lane.b32.xlu0 %v240, 127
    %v249 = vpop.permute.xlu0 %248
    %v254 = vadd.f32 %v222, %v243
    %v255 = vadd.f32 %v223, %v245
    %v256 = vadd.f32 %v224, %v247
    %v257 = vadd.f32 %v225, %v249
    %s258 = sld [smem:[#allocation5 + $0x8]]
    %v259 = vstv %s258
    %v260 = vmul.f32 %v38, %v259
    %v261 = vmul.f32 %v39, %v259
    %v262 = vmul.f32 %v44, %v259
    %v263 = vmul.f32 %v45, %v259
    %v268 = vrot.slane %v260, 2
    %v269 = vrot.slane %v261, 2
    %v270 = vsel %vm211, %v268, %v269
    %v271 = vrot.slane %v262, 2
    %v272 = vrot.slane %v263, 2
    %v273 = vsel %vm211, %v271, %v272
    %274 = vrot.lane.b32.xlu0 %v270, 126
    %v275 = vpop.permute.xlu0 %274
    %276 = vrot.lane.b32.xlu0 %v269, 126
    %v277 = vpop.permute.xlu0 %276
    %278 = vrot.lane.b32.xlu0 %v273, 126
    %v279 = vpop.permute.xlu0 %278
    %280 = vrot.lane.b32.xlu0 %v272, 126
    %v281 = vpop.permute.xlu0 %280
    %v286 = vadd.f32 %v254, %v275
    %v287 = vadd.f32 %v255, %v277
    %v288 = vadd.f32 %v256, %v279
    %v289 = vadd.f32 %v257, %v281
    %s290 = sld [smem:[#allocation5 + $0x9]]
    %v291 = vstv %s290
    %v292 = vmul.f32 %v40, %v291
    %v293 = vmul.f32 %v41, %v291
    %v294 = vmul.f32 %v46, %v291
    %v295 = vmul.f32 %v47, %v291
    %v296 = vadd.f32 %v286, %v292
    %v297 = vadd.f32 %v287, %v293
    %v298 = vadd.f32 %v288, %v294
    %v299 = vadd.f32 %v289, %v295
    %s300 = sld [smem:[#allocation5 + $0xa]]
    %v301 = vstv %s300
    %v302 = vmul.f32 %v40, %v301
    %v303 = vmul.f32 %v41, %v301
    %v304 = vmul.f32 %v46, %v301
    %v305 = vmul.f32 %v47, %v301
    %310 = vrot.lane.b32.xlu0 %v302, 127
    %v311 = vpop.permute.xlu0 %310
    %312 = vrot.lane.b32.xlu0 %v303, 127
    %v313 = vpop.permute.xlu0 %312
    %314 = vrot.lane.b32.xlu0 %v304, 127
    %v315 = vpop.permute.xlu0 %314
    %316 = vrot.lane.b32.xlu0 %v305, 127
    %v317 = vpop.permute.xlu0 %316
    %v322 = vadd.f32 %v296, %v311
    %v323 = vadd.f32 %v297, %v313
    %v324 = vadd.f32 %v298, %v315
    %v325 = vadd.f32 %v299, %v317
    %s326 = sld [smem:[#allocation5 + $0xb]]
    %v327 = vstv %s326
    %v328 = vmul.f32 %v40, %v327
    %v329 = vmul.f32 %v41, %v327
    %v330 = vmul.f32 %v46, %v327
    %v331 = vmul.f32 %v47, %v327
    %336 = vrot.lane.b32.xlu0 %v328, 126
    %v337 = vpop.permute.xlu0 %336
    %338 = vrot.lane.b32.xlu0 %v329, 126
    %v339 = vpop.permute.xlu0 %338
    %340 = vrot.lane.b32.xlu0 %v330, 126
    %v341 = vpop.permute.xlu0 %340
    %342 = vrot.lane.b32.xlu0 %v331, 126
    %v343 = vpop.permute.xlu0 %342
    %v348 = vadd.f32 %v322, %v337
    %v349 = vadd.f32 %v323, %v339
    %v350 = vadd.f32 %v324, %v341
    %v351 = vadd.f32 %v325, %v343
    %s352 = sld [smem:[#allocation5 + $0xc]]
    %v353 = vstv %s352
    %v354 = vmul.f32 %v40, %v353
    %v355 = vmul.f32 %v41, %v353
    %v356 = vmul.f32 %v46, %v353
    %v357 = vmul.f32 %v47, %v353
    %v362 = vrot.slane %v354, 1
    %v363 = vrot.slane %v355, 1
    %v364 = vsel %vm122, %v362, %v363
    %v365 = vrot.slane %v356, 1
    %v366 = vrot.slane %v357, 1
    %v367 = vsel %vm122, %v365, %v366
    %v372 = vadd.f32 %v348, %v364
    %v373 = vadd.f32 %v349, %v363
    %v374 = vadd.f32 %v350, %v367
    %v375 = vadd.f32 %v351, %v366
    %s376 = sld [smem:[#allocation5 + $0xd]]
    %v377 = vstv %s376
    %v378 = vmul.f32 %v40, %v377
    %v379 = vmul.f32 %v41, %v377
    %v380 = vmul.f32 %v46, %v377
    %v381 = vmul.f32 %v47, %v377
    %v386 = vrot.slane %v378, 1
    %v387 = vrot.slane %v379, 1
    %v388 = vsel %vm122, %v386, %v387
    %v389 = vrot.slane %v380, 1
    %v390 = vrot.slane %v381, 1
    %v391 = vsel %vm122, %v389, %v390
    %392 = vrot.lane.b32.xlu0 %v388, 127
    %v393 = vpop.permute.xlu0 %392
    %394 = vrot.lane.b32.xlu0 %v387, 127
    %v395 = vpop.permute.xlu0 %394
    %396 = vrot.lane.b32.xlu0 %v391, 127
    %v397 = vpop.permute.xlu0 %396
    %398 = vrot.lane.b32.xlu0 %v390, 127
    %v399 = vpop.permute.xlu0 %398
    %v404 = vadd.f32 %v372, %v393
    %v405 = vadd.f32 %v373, %v395
    %v406 = vadd.f32 %v374, %v397
    %v407 = vadd.f32 %v375, %v399
    %s408 = sld [smem:[#allocation5 + $0xe]]
    %v409 = vstv %s408
    %v410 = vmul.f32 %v40, %v409
    %v411 = vmul.f32 %v41, %v409
    %v412 = vmul.f32 %v46, %v409
    %v413 = vmul.f32 %v47, %v409
    %v418 = vrot.slane %v410, 1
    %v419 = vrot.slane %v411, 1
    %v420 = vsel %vm122, %v418, %v419
    %v421 = vrot.slane %v412, 1
    %v422 = vrot.slane %v413, 1
    %v423 = vsel %vm122, %v421, %v422
    %424 = vrot.lane.b32.xlu0 %v420, 126
    %v425 = vpop.permute.xlu0 %424
    %426 = vrot.lane.b32.xlu0 %v419, 126
    %v427 = vpop.permute.xlu0 %426
    %428 = vrot.lane.b32.xlu0 %v423, 126
    %v429 = vpop.permute.xlu0 %428
    %430 = vrot.lane.b32.xlu0 %v422, 126
    %v431 = vpop.permute.xlu0 %430
    %v436 = vadd.f32 %v404, %v425
    %v437 = vadd.f32 %v405, %v427
    %v438 = vadd.f32 %v406, %v429
    %v439 = vadd.f32 %v407, %v431
    %s440 = sld [smem:[#allocation5 + $0xf]]
    %v441 = vstv %s440
    %v442 = vmul.f32 %v40, %v441
    %v443 = vmul.f32 %v41, %v441
    %v444 = vmul.f32 %v46, %v441
    %v445 = vmul.f32 %v47, %v441
    %v450 = vrot.slane %v442, 2
    %v451 = vrot.slane %v443, 2
    %v452 = vsel %vm211, %v450, %v451
    %v453 = vrot.slane %v444, 2
    %v454 = vrot.slane %v445, 2
    %v455 = vsel %vm211, %v453, %v454
    %v460 = vadd.f32 %v436, %v452
    %v461 = vadd.f32 %v437, %v451
    %v462 = vadd.f32 %v438, %v455
    %v463 = vadd.f32 %v439, %v454
    %s464 = sld [smem:[#allocation5 + $0x10]]
    %v465 = vstv %s464
    %v466 = vmul.f32 %v40, %v465
    %v467 = vmul.f32 %v41, %v465
    %v468 = vmul.f32 %v46, %v465
    %v469 = vmul.f32 %v47, %v465
    %v474 = vrot.slane %v466, 2
    %v475 = vrot.slane %v467, 2
    %v476 = vsel %vm211, %v474, %v475
    %v477 = vrot.slane %v468, 2
    %v478 = vrot.slane %v469, 2
    %v479 = vsel %vm211, %v477, %v478
    %480 = vrot.lane.b32.xlu0 %v476, 127
    %v481 = vpop.permute.xlu0 %480
    %482 = vrot.lane.b32.xlu0 %v475, 127
    %v483 = vpop.permute.xlu0 %482
    %484 = vrot.lane.b32.xlu0 %v479, 127
    %v485 = vpop.permute.xlu0 %484
    %486 = vrot.lane.b32.xlu0 %v478, 127
    %v487 = vpop.permute.xlu0 %486
    %v492 = vadd.f32 %v460, %v481
    %v493 = vadd.f32 %v461, %v483
    %v494 = vadd.f32 %v462, %v485
    %v495 = vadd.f32 %v463, %v487
    %s496 = sld [smem:[#allocation5 + $0x11]]
    %v497 = vstv %s496
    %v498 = vmul.f32 %v40, %v497
    %v499 = vmul.f32 %v41, %v497
    %v500 = vmul.f32 %v46, %v497
    %v501 = vmul.f32 %v47, %v497
    %v506 = vrot.slane %v498, 2
    %v507 = vrot.slane %v499, 2
    %v508 = vsel %vm211, %v506, %v507
    %v509 = vrot.slane %v500, 2
    %v510 = vrot.slane %v501, 2
    %v511 = vsel %vm211, %v509, %v510
    %512 = vrot.lane.b32.xlu0 %v508, 126
    %v513 = vpop.permute.xlu0 %512
    %514 = vrot.lane.b32.xlu0 %v507, 126
    %v515 = vpop.permute.xlu0 %514
    %516 = vrot.lane.b32.xlu0 %v511, 126
    %v517 = vpop.permute.xlu0 %516
    %518 = vrot.lane.b32.xlu0 %v510, 126
    %v519 = vpop.permute.xlu0 %518
    %v524 = vadd.f32 %v492, %v513
    %v525 = vadd.f32 %v493, %v515
    %v526 = vadd.f32 %v494, %v517
    %v527 = vadd.f32 %v495, %v519
    %s528 = sld [smem:[#allocation5 + $0x12]]
    %v529 = vstv %s528
    %v530 = vmul.f32 %v42, %v529
    %v531 = vmul.f32 %v43, %v529
    %v532 = vmul.f32 %v48, %v529
    %v533 = vmul.f32 %v49, %v529
    %v534 = vadd.f32 %v524, %v530
    %v535 = vadd.f32 %v525, %v531
    %v536 = vadd.f32 %v526, %v532
    %v537 = vadd.f32 %v527, %v533
    %s538 = sld [smem:[#allocation5 + $0x13]]
    %v539 = vstv %s538
    %v540 = vmul.f32 %v42, %v539
    %v541 = vmul.f32 %v43, %v539
    %v542 = vmul.f32 %v48, %v539
    %v543 = vmul.f32 %v49, %v539
    %548 = vrot.lane.b32.xlu0 %v540, 127
    %v549 = vpop.permute.xlu0 %548
    %550 = vrot.lane.b32.xlu0 %v541, 127
    %v551 = vpop.permute.xlu0 %550
    %552 = vrot.lane.b32.xlu0 %v542, 127
    %v553 = vpop.permute.xlu0 %552
    %554 = vrot.lane.b32.xlu0 %v543, 127
    %v555 = vpop.permute.xlu0 %554
    %v560 = vadd.f32 %v534, %v549
    %v561 = vadd.f32 %v535, %v551
    %v562 = vadd.f32 %v536, %v553
    %v563 = vadd.f32 %v537, %v555
    %s564 = sld [smem:[#allocation5 + $0x14]]
    %v565 = vstv %s564
    %v566 = vmul.f32 %v42, %v565
    %v567 = vmul.f32 %v43, %v565
    %v568 = vmul.f32 %v48, %v565
    %v569 = vmul.f32 %v49, %v565
    %574 = vrot.lane.b32.xlu0 %v566, 126
    %v575 = vpop.permute.xlu0 %574
    %576 = vrot.lane.b32.xlu0 %v567, 126
    %v577 = vpop.permute.xlu0 %576
    %578 = vrot.lane.b32.xlu0 %v568, 126
    %v579 = vpop.permute.xlu0 %578
    %580 = vrot.lane.b32.xlu0 %v569, 126
    %v581 = vpop.permute.xlu0 %580
    %v586 = vadd.f32 %v560, %v575
    %v587 = vadd.f32 %v561, %v577
    %v588 = vadd.f32 %v562, %v579
    %v589 = vadd.f32 %v563, %v581
    %s590 = sld [smem:[#allocation5 + $0x15]]
    %v591 = vstv %s590
    %v592 = vmul.f32 %v42, %v591
    %v593 = vmul.f32 %v43, %v591
    %v594 = vmul.f32 %v48, %v591
    %v595 = vmul.f32 %v49, %v591
    %v600 = vrot.slane %v592, 1
    %v601 = vrot.slane %v593, 1
    %v602 = vsel %vm122, %v600, %v601
    %v603 = vrot.slane %v594, 1
    %v604 = vrot.slane %v595, 1
    %v605 = vsel %vm122, %v603, %v604
    %v610 = vadd.f32 %v586, %v602
    %v611 = vadd.f32 %v587, %v601
    %v612 = vadd.f32 %v588, %v605
    %v613 = vadd.f32 %v589, %v604
    %s614 = sld [smem:[#allocation5 + $0x16]]
    %v615 = vstv %s614
    %v616 = vmul.f32 %v42, %v615
    %v617 = vmul.f32 %v43, %v615
    %v618 = vmul.f32 %v48, %v615
    %v619 = vmul.f32 %v49, %v615
    %v624 = vrot.slane %v616, 1
    %v625 = vrot.slane %v617, 1
    %v626 = vsel %vm122, %v624, %v625
    %v627 = vrot.slane %v618, 1
    %v628 = vrot.slane %v619, 1
    %v629 = vsel %vm122, %v627, %v628
    %630 = vrot.lane.b32.xlu0 %v626, 127
    %v631 = vpop.permute.xlu0 %630
    %632 = vrot.lane.b32.xlu0 %v625, 127
    %v633 = vpop.permute.xlu0 %632
    %634 = vrot.lane.b32.xlu0 %v629, 127
    %v635 = vpop.permute.xlu0 %634
    %636 = vrot.lane.b32.xlu0 %v628, 127
    %v637 = vpop.permute.xlu0 %636
    %v642 = vadd.f32 %v610, %v631
    %v643 = vadd.f32 %v611, %v633
    %v644 = vadd.f32 %v612, %v635
    %v645 = vadd.f32 %v613, %v637
    %s646 = sld [smem:[#allocation5 + $0x17]]
    %v647 = vstv %s646
    %v648 = vmul.f32 %v42, %v647
    %v649 = vmul.f32 %v43, %v647
    %v650 = vmul.f32 %v48, %v647
    %v651 = vmul.f32 %v49, %v647
    %v656 = vrot.slane %v648, 1
    %v657 = vrot.slane %v649, 1
    %v658 = vsel %vm122, %v656, %v657
    %v659 = vrot.slane %v650, 1
    %v660 = vrot.slane %v651, 1
    %v661 = vsel %vm122, %v659, %v660
    %662 = vrot.lane.b32.xlu0 %v658, 126
    %v663 = vpop.permute.xlu0 %662
    %664 = vrot.lane.b32.xlu0 %v657, 126
    %v665 = vpop.permute.xlu0 %664
    %666 = vrot.lane.b32.xlu0 %v661, 126
    %v667 = vpop.permute.xlu0 %666
    %668 = vrot.lane.b32.xlu0 %v660, 126
    %v669 = vpop.permute.xlu0 %668
    %v674 = vadd.f32 %v642, %v663
    %v675 = vadd.f32 %v643, %v665
    %v676 = vadd.f32 %v644, %v667
    %v677 = vadd.f32 %v645, %v669
    %s678 = sld [smem:[#allocation5 + $0x18]]
    %v679 = vstv %s678
    %v680 = vmul.f32 %v42, %v679
    %v681 = vmul.f32 %v43, %v679
    %v682 = vmul.f32 %v48, %v679
    %v683 = vmul.f32 %v49, %v679
    %v688 = vrot.slane %v680, 2
    %v689 = vrot.slane %v681, 2
    %v690 = vsel %vm211, %v688, %v689
    %v691 = vrot.slane %v682, 2
    %v692 = vrot.slane %v683, 2
    %v693 = vsel %vm211, %v691, %v692
    %v698 = vadd.f32 %v674, %v690
    %v699 = vadd.f32 %v675, %v689
    %v700 = vadd.f32 %v676, %v693
    %v701 = vadd.f32 %v677, %v692
    %s702 = sld [smem:[#allocation5 + $0x19]]
    %v703 = vstv %s702
    %v704 = vmul.f32 %v42, %v703
    %v705 = vmul.f32 %v43, %v703
    %v706 = vmul.f32 %v48, %v703
    %v707 = vmul.f32 %v49, %v703
    %v712 = vrot.slane %v704, 2
    %v713 = vrot.slane %v705, 2
    %v714 = vsel %vm211, %v712, %v713
    %v715 = vrot.slane %v706, 2
    %v716 = vrot.slane %v707, 2
    %v717 = vsel %vm211, %v715, %v716
    %718 = vrot.lane.b32.xlu0 %v714, 127
    %v719 = vpop.permute.xlu0 %718
    %720 = vrot.lane.b32.xlu0 %v713, 127
    %v721 = vpop.permute.xlu0 %720
    %722 = vrot.lane.b32.xlu0 %v717, 127
    %v723 = vpop.permute.xlu0 %722
    %724 = vrot.lane.b32.xlu0 %v716, 127
    %v725 = vpop.permute.xlu0 %724
    %v730 = vadd.f32 %v698, %v719
    %v731 = vadd.f32 %v699, %v721
    %v732 = vadd.f32 %v700, %v723
    %v733 = vadd.f32 %v701, %v725
    %s734 = sld [smem:[#allocation5 + $0x1a]]
    %v735 = vstv %s734
    %v736 = vmul.f32 %v42, %v735
    %v737 = vmul.f32 %v43, %v735
    %v738 = vmul.f32 %v48, %v735
    %v739 = vmul.f32 %v49, %v735
    %v744 = vrot.slane %v736, 2
    %v745 = vrot.slane %v737, 2
    %v746 = vsel %vm211, %v744, %v745
    %v747 = vrot.slane %v738, 2
    %v748 = vrot.slane %v739, 2
    %v749 = vsel %vm211, %v747, %v748
    %750 = vrot.lane.b32.xlu0 %v746, 126
    %v751 = vpop.permute.xlu0 %750
    %752 = vrot.lane.b32.xlu0 %v745, 126
    %v753 = vpop.permute.xlu0 %752
    %754 = vrot.lane.b32.xlu0 %v749, 126
    %v755 = vpop.permute.xlu0 %754
    %756 = vrot.lane.b32.xlu0 %v748, 126
    %v757 = vpop.permute.xlu0 %756
    %v762 = vadd.f32 %v730, %v751
    %v763 = vadd.f32 %v731, %v753
    %v764 = vadd.f32 %v732, %v755
    %v765 = vadd.f32 %v733, %v757
    %vm766 = vcmask 113664
    %767 = vst.msk [vmem:[%s2] sm:$0xff] %vm766, %v762
    %vm768 = vcmask 111616
    %769 = vst.msk [vmem:[%s2 + $0x8] sm:$0x3f] %vm768, %v763
    %770 = vst.msk [vmem:[%s2 + $0x10] sm:$0xff] %vm766, %v764
    %771 = vst.msk [vmem:[%s2 + $0x18] sm:$0x3f] %vm768, %v765
    // Predicated region
    $region18: #{tpu_custom_call.1} parent=1 // pred_check
      _
    $region19: #{tpu_custom_call.1} parent=1 // pred_check_branch
      %773 = sbr.rel (0) target = $region21
    $region20: #{tpu_custom_call.1} parent=1 // pred_region
      _
    $region21: #{tpu_custom_call.1} parent=1 // pred_fallthru
      _
    // Predicated region
    $region22: #{tpu_custom_call.1} parent=1 // pred_check
      _
    $region23: #{tpu_custom_call.1} parent=1 // pred_check_branch
      %775 = sbr.rel (0) target = $region25
    $region24: #{tpu_custom_call.1} parent=1 // pred_region
      _
    $region25: #{tpu_custom_call.1} parent=1 // pred_fallthru
      _
    %776 = vsyncpa [#allocation3], 1
    %777 = vsyncpa [#allocation4], 1

</llo_original>
